<compile_context>
chip_gen: v7x
topology: tpu7x:2x2x1
jax: 0.10.0
libtpu: 0.0.40
codegen_flags: <defaults>
</compile_context>

<pallas_src>
import jax
import jax.numpy as jnp
from jax.experimental import pallas as pl
from jax.experimental.pallas import tpu as pltpu


# ------------------------------- kernel --------------------------------------

def _fusion_kernel(x1_ref, x2_ref, w1_ref, w2_ref, b_ref, o_ref):
    # x1_ref: (1, C1, thw), x2_ref: (1, C2, thw)   activations, lane-dense HW
    # w1_ref: (Co, C1),     w2_ref: (Co, C2)       BN-folded 1x1-conv weights
    # b_ref : (Co, 1) f32                          BN-folded bias
    #
    # 1x1 conv over the (virtual) channel concat == two MXU matmuls summed.
    # Inputs stay in their native dtype; accumulation is f32 on the MXU.
    acc = jnp.dot(w1_ref[...], x1_ref[0], preferred_element_type=jnp.float32)
    acc = acc + jnp.dot(w2_ref[...], x2_ref[0], preferred_element_type=jnp.float32)
    acc = acc + b_ref[...]                         # (Co, 1) broadcasts over lanes
    o_ref[0] = acc.astype(o_ref.dtype)


# ------------------------------ tiling helpers --------------------------------

def _round_up(x, m):
    return ((x + m - 1) // m) * m


def _vmem_limit_bytes():
    """~3/4 of physical VMEM: ~96 MiB on v5e/v6e, ~48 MiB on v7x."""
    cap = 64 * 1024 * 1024                       # conservative fallback (v7x TC)
    try:
        cap = int(pltpu.get_tpu_info().vmem_capacity_bytes)
    except Exception:
        pass
    return (cap * 3) // 4


def _pick_hw_tile(hw, n, c1, c2, co, act_itemsize, out_itemsize, vmem_limit):
    """Byte-budget, lane-dense (multiple-of-128) HW tile."""
    hw128 = _round_up(hw, 128)
    tile_budget = (vmem_limit * 2) // 3          # headroom for compiler scratch
    weight_bytes = 2 * (co * (c1 + c2) * act_itemsize + co * 4)
    per_lane = 2 * ((c1 + c2) * act_itemsize + co * out_itemsize)   # dbl-buffered
    avail = max(tile_budget - weight_bytes, 128 * per_lane)
    thw = max(128, (avail // per_lane) // 128 * 128)
    thw = min(thw, hw128)
    # Give v7x's two TensorCores at least 2 parallel grid steps when N == 1.
    if n == 1 and hw128 >= 256:
        thw = min(thw, _round_up(hw128 // 2, 128))
    return thw


# ------------------------------ param folding ---------------------------------

def fold_params(params, c1, compute_dtype, eps=1e-5):
    """Fold Conv2d bias + eval-mode BatchNorm2d into the 1x1-conv weights/bias."""
    w = params["conv_w"][:, :, 0, 0].astype(jnp.float32)               # (Co, Cin)
    s = params["bn_gamma"] / jnp.sqrt(params["bn_var"] + eps)          # (Co,)
    w_eff = w * s[:, None]                                             # (Co, Cin)
    b_eff = s * (params["conv_b"] - params["bn_mean"]) + params["bn_beta"]
    w1 = w_eff[:, :c1].astype(compute_dtype)
    w2 = w_eff[:, c1:].astype(compute_dtype)
    return w1, w2, b_eff.astype(jnp.float32)[:, None]                  # (Co, 1)


# ------------------------------ pallas wrapper ---------------------------------

def _call(x1, x2, w1, w2, b, *, thw, grid, out_dtype, hw_pad, vmem_limit,
          single_buffer_weights):
    n, c1, _ = x1.shape
    _, c2, _ = x2.shape
    co = w1.shape[0]

    def const_spec(shape):
        # Weights/bias use a constant index_map; single-buffer them to reclaim
        # VMEM for larger activation tiles.
        if single_buffer_weights:
            return pl.BlockSpec(shape, lambda i, t: (0, 0),
                                pipeline_mode=pl.Buffered(1))
        return pl.BlockSpec(shape, lambda i, t: (0, 0))

    return pl.pallas_call(
        _fusion_kernel,
        out_shape=jax.ShapeDtypeStruct((n, co, hw_pad), out_dtype),
        grid_spec=pltpu.PrefetchScalarGridSpec(
            num_scalar_prefetch=0,
            grid=grid,
            in_specs=[
                pl.BlockSpec((1, c1, thw), lambda i, t: (i, 0, t)),
                pl.BlockSpec((1, c2, thw), lambda i, t: (i, 0, t)),
                const_spec((co, c1)),
                const_spec((co, c2)),
                const_spec((co, 1)),
            ],
            out_specs=pl.BlockSpec((1, co, thw), lambda i, t: (i, 0, t)),
        ),
        compiler_params=pltpu.CompilerParams(
            dimension_semantics=("parallel", "parallel"),
            vmem_limit_bytes=vmem_limit),
    )(x1, x2, w1, w2, b)


def fusion_forward(future1, future2, params, eps=1e-5, compute_dtype=None):
    N, C1, H, W = future1.shape
    _, C2, _, _ = future2.shape
    Co = params["conv_w"].shape[0]
    HW = H * W

    # One compute dtype for both inputs and the output (mirrors the nn.Module).
    # Passing compute_dtype=jnp.bfloat16 halves HBM traffic (numerics tradeoff).
    if compute_dtype is None:
        compute_dtype = jnp.result_type(future1.dtype, future2.dtype)
    out_dtype = compute_dtype

    w1, w2, b = fold_params(params, C1, compute_dtype, eps)
    x1 = future1.astype(compute_dtype).reshape(N, C1, HW)
    x2 = future2.astype(compute_dtype).reshape(N, C2, HW)

    vmem_limit = _vmem_limit_bytes()
    thw = _pick_hw_tile(HW, N, C1, C2, Co,
                        jnp.dtype(compute_dtype).itemsize,
                        jnp.dtype(out_dtype).itemsize,
                        vmem_limit)
    hw_pad = _round_up(HW, thw)
    if hw_pad != HW:
        pad = ((0, 0), (0, 0), (0, hw_pad - HW))
        x1 = jnp.pad(x1, pad)
        x2 = jnp.pad(x2, pad)
    grid = (N, hw_pad // thw)

    kwargs = dict(thw=thw, grid=grid, out_dtype=out_dtype, hw_pad=hw_pad,
                  vmem_limit=vmem_limit)
    try:
        out = _call(x1, x2, w1, w2, b, single_buffer_weights=True, **kwargs)
    except Exception:
        # JAX versions without BlockSpec(pipeline_mode=...) support: fall back
        # to default double-buffered weight blocks.
        out = _call(x1, x2, w1, w2, b, single_buffer_weights=False, **kwargs)

    if hw_pad != HW:
        out = out[:, :, :HW]
    return out.reshape(N, Co, H, W)


# ------------------------------ params ----------------------------------------

def init_params(key, cin, cout):
    kw, kb, kg, kbe, km, kv = jax.random.split(key, 6)
    conv_w = 0.1 * jax.random.normal(kw, (cout, cin, 1, 1), jnp.float32)
    conv_b = 0.1 * jax.random.normal(kb, (cout,), jnp.float32)
    # TODO(synk): BatchNorm2d is implemented in eval (inference) mode with fixed
    # running stats; training-mode batch-statistic updates are not implemented.
    bn_gamma = 1.0 + 0.1 * jax.random.normal(kg, (cout,), jnp.float32)
    bn_beta = 0.1 * jax.random.normal(kbe, (cout,), jnp.float32)
    bn_mean = 0.1 * jax.random.normal(km, (cout,), jnp.float32)
    bn_var = 1.0 + 0.1 * jnp.abs(jax.random.normal(kv, (cout,), jnp.float32))
    return dict(conv_w=conv_w, conv_b=conv_b, bn_gamma=bn_gamma,
                bn_beta=bn_beta, bn_mean=bn_mean, bn_var=bn_var)


# --------------------------- pure-JAX reference --------------------------------

def fusion_reference(future1, future2, params, eps=1e-5):
    x = jnp.concatenate([future1, future2], axis=1)
    y = jax.lax.conv_general_dilated(
        x, params["conv_w"], window_strides=(1, 1), padding="VALID",
        dimension_numbers=("NCHW", "OIHW", "NCHW"))
    y = y + params["conv_b"][None, :, None, None]
    s = params["bn_gamma"] / jnp.sqrt(params["bn_var"] + eps)
    y = (y - params["bn_mean"][None, :, None, None]) * s[None, :, None, None] \
        + params["bn_beta"][None, :, None, None]
    return y


if __name__ == "__main__":
    key = jax.random.PRNGKey(0)
    N, C1, C2, Co, H, W = 2, 16, 16, 16, 16, 16      # in_channel=32, out_channel=16
    k1, k2, kp = jax.random.split(key, 3)
    future1 = jax.random.normal(k1, (N, C1, H, W), jnp.float32)
    future2 = jax.random.normal(k2, (N, C2, H, W), jnp.float32)
    params = init_params(kp, C1 + C2, Co)

    out = fusion_forward(future1, future2, params)
    jax.block_until_ready(out)

    ref = fusion_reference(future1, future2, params)
    assert out.shape == (N, Co, H, W)
    assert jnp.allclose(out, ref, atol=2e-3, rtol=2e-3)

    print("KERNEL_OK")
</pallas_src>

<mosaic_0001>
module attributes {stable_mosaic.version = 11 : i64} {
  func.func @_fusion_kernel(%arg0: i32, %arg1: i32, %arg2: memref<1x16x256xf32, #tpu.memory_space<vmem>>, %arg3: memref<1x16x256xf32, #tpu.memory_space<vmem>>, %arg4: memref<16x16xf32, #tpu.memory_space<vmem>>, %arg5: memref<16x16xf32, #tpu.memory_space<vmem>>, %arg6: memref<16x1xf32, #tpu.memory_space<vmem>>, %arg7: memref<1x16x256xf32, #tpu.memory_space<vmem>>) attributes {dimension_semantics = [#tpu.dimension_semantics<parallel>, #tpu.dimension_semantics<parallel>], iteration_bounds = array<i64: 2, 1>, scalar_prefetch = 0 : i64, scratch_operands = 0 : i64, tpu.core_type = #tpu.core_type<tc>, window_params = [{transform_indices = @transform_0, window_bounds = array<i64: 1, 16, 256>}, {transform_indices = @transform_1, window_bounds = array<i64: 1, 16, 256>}, {pipeline_mode = #tpu.pipeline_mode<synchronous>, transform_indices = @transform_2, window_bounds = array<i64: 16, 16>}, {pipeline_mode = #tpu.pipeline_mode<synchronous>, transform_indices = @transform_3, window_bounds = array<i64: 16, 16>}, {pipeline_mode = #tpu.pipeline_mode<synchronous>, transform_indices = @transform_4, window_bounds = array<i64: 16, 1>}, {transform_indices = @transform_5, window_bounds = array<i64: 1, 16, 256>}]} {
    %c0 = arith.constant 0 : index
    %c0_0 = arith.constant 0 : index
    %0 = vector.load %arg4[%c0, %c0_0] : memref<16x16xf32, #tpu.memory_space<vmem>>, vector<16x16xf32>
    %c0_1 = arith.constant 0 : index
    %c0_2 = arith.constant 0 : index
    %c0_3 = arith.constant 0 : index
    %1 = vector.load %arg2[%c0_1, %c0_2, %c0_3] : memref<1x16x256xf32, #tpu.memory_space<vmem>>, vector<1x16x256xf32>
    %2 = vector.shape_cast %1 : vector<1x16x256xf32> to vector<16x256xf32>
    %cst = arith.constant dense<0.000000e+00> : vector<16x256xf32>
    %3 = tpu.matmul %0, %2, %cst {dimension_numbers = #tpu.dot_dimension_numbers<[1], [0], [0], [1], [0, 0, 1, 1], [], []>} : vector<16x16xf32>, vector<16x256xf32>, vector<16x256xf32> -> vector<16x256xf32>
    %c0_4 = arith.constant 0 : index
    %c0_5 = arith.constant 0 : index
    %4 = vector.load %arg5[%c0_4, %c0_5] : memref<16x16xf32, #tpu.memory_space<vmem>>, vector<16x16xf32>
    %c0_6 = arith.constant 0 : index
    %c0_7 = arith.constant 0 : index
    %c0_8 = arith.constant 0 : index
    %5 = vector.load %arg3[%c0_6, %c0_7, %c0_8] : memref<1x16x256xf32, #tpu.memory_space<vmem>>, vector<1x16x256xf32>
    %6 = vector.shape_cast %5 : vector<1x16x256xf32> to vector<16x256xf32>
    %cst_9 = arith.constant dense<0.000000e+00> : vector<16x256xf32>
    %7 = tpu.matmul %4, %6, %cst_9 {dimension_numbers = #tpu.dot_dimension_numbers<[1], [0], [0], [1], [0, 0, 1, 1], [], []>} : vector<16x16xf32>, vector<16x256xf32>, vector<16x256xf32> -> vector<16x256xf32>
    %8 = arith.addf %3, %7 : vector<16x256xf32>
    %c0_10 = arith.constant 0 : index
    %c0_11 = arith.constant 0 : index
    %9 = vector.load %arg6[%c0_10, %c0_11] : memref<16x1xf32, #tpu.memory_space<vmem>>, vector<16x1xf32>
    %10 = vector.broadcast %9 : vector<16x1xf32> to vector<16x256xf32>
    %11 = arith.addf %8, %10 : vector<16x256xf32>
    %c0_12 = arith.constant 0 : index
    %c0_13 = arith.constant 0 : index
    %c0_14 = arith.constant 0 : index
    %12 = vector.load %arg7[%c0_12, %c0_13, %c0_14] : memref<1x16x256xf32, #tpu.memory_space<vmem>>, vector<1x16x256xf32>
    %13 = vector.shape_cast %12 : vector<1x16x256xf32> to vector<16x256xf32>
    %14 = vector.shape_cast %11 : vector<16x256xf32> to vector<1x16x256xf32>
    tpu.vector_store %arg7[%c0_12, %c0_13, %c0_14], %14 {strides = array<i32>} : memref<1x16x256xf32, #tpu.memory_space<vmem>>, vector<1x16x256xf32>,
    return
  }
  func.func @transform_0(%arg0: i32, %arg1: i32) -> (i32, i32, i32) {
    %c0_i32 = arith.constant 0 : i32
    %c0_i32_0 = arith.constant 0 : i32
    return %arg0, %c0_i32, %arg1 : i32, i32, i32
  }
  func.func @transform_1(%arg0: i32, %arg1: i32) -> (i32, i32, i32) {
    %c0_i32 = arith.constant 0 : i32
    %c0_i32_0 = arith.constant 0 : i32
    return %arg0, %c0_i32, %arg1 : i32, i32, i32
  }
  func.func @transform_2(%arg0: i32, %arg1: i32) -> (i32, i32) {
    %c0_i32 = arith.constant 0 : i32
    %c0_i32_0 = arith.constant 0 : i32
    %c0_i32_1 = arith.constant 0 : i32
    return %c0_i32, %c0_i32_0 : i32, i32
  }
  func.func @transform_3(%arg0: i32, %arg1: i32) -> (i32, i32) {
    %c0_i32 = arith.constant 0 : i32
    %c0_i32_0 = arith.constant 0 : i32
    %c0_i32_1 = arith.constant 0 : i32
    return %c0_i32, %c0_i32_0 : i32, i32
  }
  func.func @transform_4(%arg0: i32, %arg1: i32) -> (i32, i32) {
    %c0_i32 = arith.constant 0 : i32
    %c0_i32_0 = arith.constant 0 : i32
    %c0_i32_1 = arith.constant 0 : i32
    return %c0_i32, %c0_i32_0 : i32, i32
  }
  func.func @transform_5(%arg0: i32, %arg1: i32) -> (i32, i32, i32) {
    %c0_i32 = arith.constant 0 : i32
    %c0_i32_0 = arith.constant 0 : i32
    return %arg0, %c0_i32, %arg1 : i32, i32, i32
  }
}

module attributes {stable_mosaic.version = 11 : i64} {
  func.func @_fusion_kernel(%arg0: i32, %arg1: i32, %arg2: memref<1x16x256xf32, #tpu.memory_space<vmem>>, %arg3: memref<1x16x256xf32, #tpu.memory_space<vmem>>, %arg4: memref<16x16xf32, #tpu.memory_space<vmem>>, %arg5: memref<16x16xf32, #tpu.memory_space<vmem>>, %arg6: memref<16x1xf32, #tpu.memory_space<vmem>>, %arg7: memref<1x16x256xf32, #tpu.memory_space<vmem>>) attributes {dimension_semantics = [#tpu.dimension_semantics<parallel>, #tpu.dimension_semantics<parallel>], iteration_bounds = array<i64: 2, 1>, scalar_prefetch = 0 : i64, scratch_operands = 0 : i64, tpu.core_type = #tpu.core_type<tc>, window_params = [{transform_indices = @transform_0, window_bounds = array<i64: 1, 16, 256>}, {transform_indices = @transform_1, window_bounds = array<i64: 1, 16, 256>}, {pipeline_mode = #tpu.pipeline_mode<synchronous>, transform_indices = @transform_2, window_bounds = array<i64: 16, 16>}, {pipeline_mode = #tpu.pipeline_mode<synchronous>, transform_indices = @transform_3, window_bounds = array<i64: 16, 16>}, {pipeline_mode = #tpu.pipeline_mode<synchronous>, transform_indices = @transform_4, window_bounds = array<i64: 16, 1>}, {transform_indices = @transform_5, window_bounds = array<i64: 1, 16, 256>}]} {
    %c0 = arith.constant 0 : index
    %c0_0 = arith.constant 0 : index
    %0 = vector.load %arg4[%c0, %c0_0] : memref<16x16xf32, #tpu.memory_space<vmem>>, vector<16x16xf32>
    %c0_1 = arith.constant 0 : index
    %c0_2 = arith.constant 0 : index
    %c0_3 = arith.constant 0 : index
    %1 = vector.load %arg2[%c0_1, %c0_2, %c0_3] : memref<1x16x256xf32, #tpu.memory_space<vmem>>, vector<1x16x256xf32>
    %2 = vector.shape_cast %1 : vector<1x16x256xf32> to vector<16x256xf32>
    %cst = arith.constant dense<0.000000e+00> : vector<16x256xf32>
    %3 = tpu.matmul %0, %2, %cst {dimension_numbers = #tpu.dot_dimension_numbers<[1], [0], [0], [1], [0, 0, 1, 1], [], []>} : vector<16x16xf32>, vector<16x256xf32>, vector<16x256xf32> -> vector<16x256xf32>
    %c0_4 = arith.constant 0 : index
    %c0_5 = arith.constant 0 : index
    %4 = vector.load %arg5[%c0_4, %c0_5] : memref<16x16xf32, #tpu.memory_space<vmem>>, vector<16x16xf32>
    %c0_6 = arith.constant 0 : index
    %c0_7 = arith.constant 0 : index
    %c0_8 = arith.constant 0 : index
    %5 = vector.load %arg3[%c0_6, %c0_7, %c0_8] : memref<1x16x256xf32, #tpu.memory_space<vmem>>, vector<1x16x256xf32>
    %6 = vector.shape_cast %5 : vector<1x16x256xf32> to vector<16x256xf32>
    %cst_9 = arith.constant dense<0.000000e+00> : vector<16x256xf32>
    %7 = tpu.matmul %4, %6, %cst_9 {dimension_numbers = #tpu.dot_dimension_numbers<[1], [0], [0], [1], [0, 0, 1, 1], [], []>} : vector<16x16xf32>, vector<16x256xf32>, vector<16x256xf32> -> vector<16x256xf32>
    %8 = arith.addf %3, %7 : vector<16x256xf32>
    %c0_10 = arith.constant 0 : index
    %c0_11 = arith.constant 0 : index
    %9 = vector.load %arg6[%c0_10, %c0_11] : memref<16x1xf32, #tpu.memory_space<vmem>>, vector<16x1xf32>
    %10 = vector.broadcast %9 : vector<16x1xf32> to vector<16x256xf32>
    %11 = arith.addf %8, %10 : vector<16x256xf32>
    %c0_12 = arith.constant 0 : index
    %c0_13 = arith.constant 0 : index
    %c0_14 = arith.constant 0 : index
    %12 = vector.load %arg7[%c0_12, %c0_13, %c0_14] : memref<1x16x256xf32, #tpu.memory_space<vmem>>, vector<1x16x256xf32>
    %13 = vector.shape_cast %12 : vector<1x16x256xf32> to vector<16x256xf32>
    %14 = vector.shape_cast %11 : vector<16x256xf32> to vector<1x16x256xf32>
    tpu.vector_store %arg7[%c0_12, %c0_13, %c0_14], %14 {strides = array<i32>} : memref<1x16x256xf32, #tpu.memory_space<vmem>>, vector<1x16x256xf32>,
    return
  }
  func.func @transform_0(%arg0: i32, %arg1: i32) -> (i32, i32, i32) {
    %c0_i32 = arith.constant 0 : i32
    %c0_i32_0 = arith.constant 0 : i32
    return %arg0, %c0_i32, %arg1 : i32, i32, i32
  }
  func.func @transform_1(%arg0: i32, %arg1: i32) -> (i32, i32, i32) {
    %c0_i32 = arith.constant 0 : i32
    %c0_i32_0 = arith.constant 0 : i32
    return %arg0, %c0_i32, %arg1 : i32, i32, i32
  }
  func.func @transform_2(%arg0: i32, %arg1: i32) -> (i32, i32) {
    %c0_i32 = arith.constant 0 : i32
    %c0_i32_0 = arith.constant 0 : i32
    %c0_i32_1 = arith.constant 0 : i32
    return %c0_i32, %c0_i32_0 : i32, i32
  }
  func.func @transform_3(%arg0: i32, %arg1: i32) -> (i32, i32) {
    %c0_i32 = arith.constant 0 : i32
    %c0_i32_0 = arith.constant 0 : i32
    %c0_i32_1 = arith.constant 0 : i32
    return %c0_i32, %c0_i32_0 : i32, i32
  }
  func.func @transform_4(%arg0: i32, %arg1: i32) -> (i32, i32) {
    %c0_i32 = arith.constant 0 : i32
    %c0_i32_0 = arith.constant 0 : i32
    %c0_i32_1 = arith.constant 0 : i32
    return %c0_i32, %c0_i32_0 : i32, i32
  }
  func.func @transform_5(%arg0: i32, %arg1: i32) -> (i32, i32, i32) {
    %c0_i32 = arith.constant 0 : i32
    %c0_i32_0 = arith.constant 0 : i32
    return %arg0, %c0_i32, %arg1 : i32, i32, i32
  }
}

</mosaic_0001>

<llo_original>
// kernel: tpu_custom_call.1
$region0: #{tpu_custom_call.1}
  #allocation0 [shape = 'u32[]', space=smem, size = 0x4, offset = 0x4, fixed_abs, tag = 'smem constant byte address 0x4 - core index']
  #allocation1 [shape = 'u32[144,128]{1,0:T(1,128)}', space=vmem, size = 0x12000, scoped, tag = 'internal scratch']
  %s0 = inlined_call_operand.hbm [shape: f32[2,16,256], index: 0, kind: input, shape index: {}]
  %s1 = inlined_call_operand.hbm [shape: f32[2,16,256], index: 1, kind: input, shape index: {}]
  %s2 = inlined_call_operand.vmem [shape: f32[16,16], index: 2, kind: input, shape index: {}]
  %s3 = inlined_call_operand.hbm [shape: f32[16,16], index: 3, kind: input, shape index: {}]
  %s4 = inlined_call_operand.vmem [shape: f32[16,1], index: 4, kind: input, shape index: {}]
  %s5 = inlined_call_operand.hbm [shape: f32[2,16,256], index: 5, kind: output, shape index: {}]
  %s6 = sld [smem:[#allocation0]]
  $region65: #{tpu_custom_call.1} parent=0
    _
  %s8 = ssub.s32 1, %s6
  %s9 = scalar_select 0, %s8, %s6
  $region1: #{tpu_custom_call.1} parent=0
    #allocation2 [shape = 'u8[32768]{0}', space=vmem, size = 0x8000, scoped, tag = 'input window, operand 0']
    #allocation3 [shape = 's32[2]{0}', space=sflag, size = 0x8, scoped, tag = 'scoped memory for tpu_custom_call.1']
    #allocation4 [shape = 's32[2]{0}', space=sflag, size = 0x8, scoped, tag = 'scoped memory for tpu_custom_call.1']
    #allocation5 [shape = 'u8[32768]{0}', space=vmem, size = 0x8000, scoped, tag = 'input window, operand 1']
    #allocation6 [shape = 's32[2]{0}', space=sflag, size = 0x8, scoped, tag = 'scoped memory for tpu_custom_call.1']
    #allocation7 [shape = 'u8[8192]{0}', space=vmem, size = 0x2000, scoped, tag = 'input window, operand 3, single buffered']
    #allocation8 [shape = 'u8[32768]{0}', space=vmem, size = 0x8000, scoped, tag = 'output window, operand 0']
    %10 = vsyncpa [#allocation3], 0
    %s11 = scalar_lea.sflag [#allocation3], 1
    %12 = vsyncpa %s11, 0
    %13 = vsyncpa [#allocation6], 0
    %s14 = scalar_lea.sflag [#allocation6], 1
    %15 = vsyncpa %s14, 0
    %16 = vsyncpa [#allocation4], 0
    %s17 = scalar_lea.sflag [#allocation4], 1
    %18 = vsyncpa %s17, 0
    loop: start=0, step=1, limit=4
    $region2: #{tpu_custom_call.1} parent=1 // loop_pre_header
      _
    $region3: #{tpu_custom_call.1} parent=1 // loop_header
      %s20 = sphi 0, %s24
      %p21 = scmp.ge.s32.totalorder %s20, 4
      %s27 = sphi 0, %s39
      %s28 = sphi 0, %s35
      %s29 = sphi 0, %s27
      %s30 = sphi 0, %s28
      %s31 = sphi 0, %s29
      %s32 = sphi 0, %s30
      %s44 = sphi 0, %s46
      %s47 = sphi 0, %s44
      %s48 = sphi 0, %s47
      %s64 = sphi 0, %s48
      %s72 = sphi 0, %s74
      %s75 = sphi 0, %s72
      %s76 = sphi 0, %s75
      %s92 = sphi 0, %s76
      %s96 = sphi 0, %s96
      %s98 = sphi 0, %s96
      %s99 = sphi 0, %s98
      %s113 = sphi 0, %s99
      %s117 = sphi 0, %s117
      %s119 = sphi 0, %s117
      %s120 = sphi 0, %s119
      %s134 = sphi 0, %s120
      %s138 = sphi 0, %s138
      %s140 = sphi 0, %s138
      %s141 = sphi 0, %s140
      %s155 = sphi 0, %s141
      %s163 = sphi 0, %s165
      %s166 = sphi 0, %s163
      %s167 = sphi 0, %s166
      %s183 = sphi 0, %s167
    $region4: #{tpu_custom_call.1} parent=1 // loop_header_branch
      %23 = sbr.rel (%p21) target = $region8
    $region5: #{tpu_custom_call.1} parent=1 // loop_body
      %s25 = ssub.s32 %s20, 1
      %s26 = ssub.s32 %s20, 2
      %s33 = sadd.s32 1, %s28
      %p34 = scmp.ge.s32.totalorder %s33, 1
      %s35 = scalar_select %p34, 0, %s33
      %s36 = sadd.s32 1, %s27
      %s37 = scalar_select %p34, %s36, %s27
      %p38 = scmp.ge.s32.totalorder %s37, 2
      %s39 = scalar_select %p38, 0, %s37
      %s40 = ssub.s32 %s27, %s39
      %s41 = ssub.s32 %s28, %s35
      %s42 = sor.u32 %s40, %s41
      %p43 = scmp.eq.s32.totalorder %s42, 0
      %s45 = sadd.s32 %s44, 1
      %s46 = scalar_select %p43, %s44, %s45
      %p49 = pneg %p43
      %p50 = scmp.eq.s32.totalorder %s20, 1
      %p51 = por %p49, %p50
      %p52 = scmp.ne.s32.totalorder %s44, %s47
      %p53 = scmp.eq.s32.totalorder %s20, 0
      %p54 = por %p52, %p53
      %p55 = scmp.ne.s32.totalorder %s44, %s47
      %p56 = scmp.eq.s32.totalorder %s25, 1
      %p57 = por %p55, %p56
      %p58 = scmp.ne.s32.totalorder %s47, %s48
      %p59 = scmp.eq.s32.totalorder %s25, 0
      %p60 = por %p58, %p59
      %p61 = scmp.ne.s32.totalorder %s47, %s48
      %p62 = scmp.eq.s32.totalorder %s26, 1
      %p63 = por %p61, %p62
      %p65 = scmp.ne.s32.totalorder %s48, %s64
      %p66 = scmp.eq.s32.totalorder %s26, 0
      %p67 = por %p65, %p66
      %s68 = ssub.s32 %s27, %s39
      %s69 = ssub.s32 %s28, %s35
      %s70 = sor.u32 %s68, %s69
      %p71 = scmp.eq.s32.totalorder %s70, 0
      %s73 = sadd.s32 %s72, 1
      %s74 = scalar_select %p71, %s72, %s73
      %p77 = pneg %p71
      %p78 = scmp.eq.s32.totalorder %s20, 1
      %p79 = por %p77, %p78
      %p80 = scmp.ne.s32.totalorder %s72, %s75
      %p81 = scmp.eq.s32.totalorder %s20, 0
      %p82 = por %p80, %p81
      %p83 = scmp.ne.s32.totalorder %s72, %s75
      %p84 = scmp.eq.s32.totalorder %s25, 1
      %p85 = por %p83, %p84
      %p86 = scmp.ne.s32.totalorder %s75, %s76
      %p87 = scmp.eq.s32.totalorder %s25, 0
      %p88 = por %p86, %p87
      %p89 = scmp.ne.s32.totalorder %s75, %s76
      %p90 = scmp.eq.s32.totalorder %s26, 1
      %p91 = por %p89, %p90
      %p93 = scmp.ne.s32.totalorder %s76, %s92
      %p94 = scmp.eq.s32.totalorder %s26, 0
      %p95 = por %p93, %p94
      %s97 = sadd.s32 %s96, 1
      %p100 = scmp.eq.s32.totalorder %s20, 1
      %p101 = scmp.ne.s32.totalorder %s96, %s98
      %p102 = scmp.eq.s32.totalorder %s20, 0
      %p103 = por %p101, %p102
      %p104 = scmp.ne.s32.totalorder %s96, %s98
      %p105 = scmp.eq.s32.totalorder %s25, 1
      %p106 = por %p104, %p105
      %p107 = scmp.ne.s32.totalorder %s98, %s99
      %p108 = scmp.eq.s32.totalorder %s25, 0
      %p109 = por %p107, %p108
      %p110 = scmp.ne.s32.totalorder %s98, %s99
      %p111 = scmp.eq.s32.totalorder %s26, 1
      %p112 = por %p110, %p111
      %p114 = scmp.ne.s32.totalorder %s99, %s113
      %p115 = scmp.eq.s32.totalorder %s26, 0
      %p116 = por %p114, %p115
      %s118 = sadd.s32 %s117, 1
      %p121 = scmp.eq.s32.totalorder %s20, 1
      %p122 = scmp.ne.s32.totalorder %s117, %s119
      %p123 = scmp.eq.s32.totalorder %s20, 0
      %p124 = por %p122, %p123
      %p125 = scmp.ne.s32.totalorder %s117, %s119
      %p126 = scmp.eq.s32.totalorder %s25, 1
      %p127 = por %p125, %p126
      %p128 = scmp.ne.s32.totalorder %s119, %s120
      %p129 = scmp.eq.s32.totalorder %s25, 0
      %p130 = por %p128, %p129
      %p131 = scmp.ne.s32.totalorder %s119, %s120
      %p132 = scmp.eq.s32.totalorder %s26, 1
      %p133 = por %p131, %p132
      %p135 = scmp.ne.s32.totalorder %s120, %s134
      %p136 = scmp.eq.s32.totalorder %s26, 0
      %p137 = por %p135, %p136
      %s139 = sadd.s32 %s138, 1
      %p142 = scmp.eq.s32.totalorder %s20, 1
      %p143 = scmp.ne.s32.totalorder %s138, %s140
      %p144 = scmp.eq.s32.totalorder %s20, 0
      %p145 = por %p143, %p144
      %p146 = scmp.ne.s32.totalorder %s138, %s140
      %p147 = scmp.eq.s32.totalorder %s25, 1
      %p148 = por %p146, %p147
      %p149 = scmp.ne.s32.totalorder %s140, %s141
      %p150 = scmp.eq.s32.totalorder %s25, 0
      %p151 = por %p149, %p150
      %p152 = scmp.ne.s32.totalorder %s140, %s141
      %p153 = scmp.eq.s32.totalorder %s26, 1
      %p154 = por %p152, %p153
      %p156 = scmp.ne.s32.totalorder %s141, %s155
      %p157 = scmp.eq.s32.totalorder %s26, 0
      %p158 = por %p156, %p157
      %s159 = ssub.s32 %s27, %s39
      %s160 = ssub.s32 %s28, %s35
      %s161 = sor.u32 %s159, %s160
      %p162 = scmp.eq.s32.totalorder %s161, 0
      %s164 = sadd.s32 %s163, 1
      %s165 = scalar_select %p162, %s163, %s164
      %p168 = pneg %p162
      %p169 = scmp.eq.s32.totalorder %s20, 1
      %p170 = por %p168, %p169
      %p171 = scmp.ne.s32.totalorder %s163, %s166
      %p172 = scmp.eq.s32.totalorder %s20, 0
      %p173 = por %p171, %p172
      %p174 = scmp.ne.s32.totalorder %s163, %s166
      %p175 = scmp.eq.s32.totalorder %s25, 1
      %p176 = por %p174, %p175
      %p177 = scmp.ne.s32.totalorder %s166, %s167
      %p178 = scmp.eq.s32.totalorder %s25, 0
      %p179 = por %p177, %p178
      %p180 = scmp.ne.s32.totalorder %s166, %s167
      %p181 = scmp.eq.s32.totalorder %s26, 1
      %p182 = por %p180, %p181
      %p184 = scmp.ne.s32.totalorder %s167, %s183
      %p185 = scmp.eq.s32.totalorder %s26, 0
      %p186 = por %p184, %p185
      %p187 = scmp.le.s32.totalorder 1, %s20
      %p188 = scmp.lt.s32.totalorder %s20, 3
      %p189 = pnand %p187, %p188
      %p190 = pneg %p189
      // Predicated region
      $region9: #{tpu_custom_call.1} parent=5 // pred_check
        _
      $region10: #{tpu_custom_call.1} parent=5 // pred_check_branch
        %192 = sbr.rel (%p189) target = $region12
      $region11: #{tpu_custom_call.1} parent=5 // pred_region
        %s193 = ssub.s32 %s20, 1
        // Predicated region
        $region13: #{tpu_custom_call.1} parent=11 // pred_check
          %p194 = pneg %p109
        $region14: #{tpu_custom_call.1} parent=11 // pred_check_branch
          %196 = sbr.rel (%p194) target = $region16
        $region15: #{tpu_custom_call.1} parent=11 // pred_region
          _
        $region16: #{tpu_custom_call.1} parent=11 // pred_fallthru
          _
        // Predicated region
        $region17: #{tpu_custom_call.1} parent=11 // pred_check
          %p197 = pneg %p130
        $region18: #{tpu_custom_call.1} parent=11 // pred_check_branch
          %199 = sbr.rel (%p197) target = $region20
        $region19: #{tpu_custom_call.1} parent=11 // pred_region
          %s201 = ssub.s32 256, 256
          %202 = vsyncadd [#allocation6], %s201
          %s203 = sshll.u32 [#allocation7], 4
          %s204 = int_to_ptr.vmem [resolvable:$true] %s203
          %209 = dma.hbm_to_vmem [thread:$0]  %s3, 256, %s204, [#allocation6], 128, 128, 8
        $region20: #{tpu_custom_call.1} parent=11 // pred_fallthru
          _
        // Predicated region
        $region21: #{tpu_custom_call.1} parent=11 // pred_check
          %p210 = pneg %p151
        $region22: #{tpu_custom_call.1} parent=11 // pred_check_branch
          %212 = sbr.rel (%p210) target = $region24
        $region23: #{tpu_custom_call.1} parent=11 // pred_region
          _
        $region24: #{tpu_custom_call.1} parent=11 // pred_fallthru
          _
      $region12: #{tpu_custom_call.1} parent=5 // pred_fallthru
        _
      %p213 = scmp.lt.s32.totalorder %s20, 2
      // Predicated region
      $region25: #{tpu_custom_call.1} parent=5 // pred_check
        %p214 = pneg %p213
      $region26: #{tpu_custom_call.1} parent=5 // pred_check_branch
        %216 = sbr.rel (%p214) target = $region28
      $region27: #{tpu_custom_call.1} parent=5 // pred_region
        // Predicated region
        $region29: #{tpu_custom_call.1} parent=27 // pred_check
          %p217 = pneg %p54
        $region30: #{tpu_custom_call.1} parent=27 // pred_check_branch
          %219 = sbr.rel (%p217) target = $region32
        $region31: #{tpu_custom_call.1} parent=27 // pred_region
          %s220 = sand.u32 %s44, 1
          %s221 = scalar_lea.sflag [#allocation3], %s220
          %s222 = sand.u32 %s44, 1
          %s223 = smul.addr %s222, 32
          %s224 = scalar_lea.vmem [#allocation2], %s223
          %s225 = smul.u32 2, %s28
          %s227 = ssub.s32 512, 512
          %228 = vsyncadd %s221, %s227
          %s229 = smul.addr %s27, 4
          %s230 = sadd.s32 %s225, %s229
          %s231 = smul.addr %s230, 128
          %s232 = scalar_lea.hbm %s0, %s231
          %s233 = sshll.u32 %s224, 4
          %s234 = int_to_ptr.vmem [resolvable:$true] %s233
          %239 = dma.hbm_to_vmem [thread:$0]  %s232, 512, %s234, %s221, 256, 256, 16
        $region32: #{tpu_custom_call.1} parent=27 // pred_fallthru
          _
        // Predicated region
        $region33: #{tpu_custom_call.1} parent=27 // pred_check
          %p240 = pneg %p82
        $region34: #{tpu_custom_call.1} parent=27 // pred_check_branch
          %242 = sbr.rel (%p240) target = $region36
        $region35: #{tpu_custom_call.1} parent=27 // pred_region
          %s243 = sand.u32 %s20, 1
          %s244 = scalar_lea.sflag [#allocation6], %s243
          %s245 = sand.u32 %s72, 1
          %s246 = smul.addr %s245, 32
          %s247 = scalar_lea.vmem [#allocation5], %s246
          %s248 = smul.u32 2, %s28
          %s250 = ssub.s32 512, 512
          %251 = vsyncadd %s244, %s250
          %s252 = smul.addr %s27, 4
          %s253 = sadd.s32 %s248, %s252
          %s254 = smul.addr %s253, 128
          %s255 = scalar_lea.hbm %s1, %s254
          %s256 = sshll.u32 %s247, 4
          %s257 = int_to_ptr.vmem [resolvable:$true] %s256
          %262 = dma.hbm_to_vmem [thread:$0]  %s255, 512, %s257, %s244, 256, 256, 16
        $region36: #{tpu_custom_call.1} parent=27 // pred_fallthru
          _
      $region28: #{tpu_custom_call.1} parent=5 // pred_fallthru
        _
      %p263 = scmp.le.s32.totalorder 1, %s20
      %p264 = scmp.lt.s32.totalorder %s20, 3
      %p265 = pnand %p263, %p264
      %p266 = pneg %p265
      // Predicated region
      $region37: #{tpu_custom_call.1} parent=5 // pred_check
        _
      $region38: #{tpu_custom_call.1} parent=5 // pred_check_branch
        %268 = sbr.rel (%p265) target = $region40
      $region39: #{tpu_custom_call.1} parent=5 // pred_region
        %s269 = ssub.s32 %s20, 1
        %s270 = sand.u32 %s47, 1
        %s271 = scalar_lea.sflag [#allocation3], %s270
        %s272 = sand.u32 %s47, 1
        %s273 = smul.addr %s272, 32
        %s274 = scalar_lea.vmem [#allocation2], %s273
        // Predicated region
        $region41: #{tpu_custom_call.1} parent=39 // pred_check
          %p275 = pneg %p60
        $region42: #{tpu_custom_call.1} parent=39 // pred_check_branch
          %277 = sbr.rel (%p275) target = $region44
        $region43: #{tpu_custom_call.1} parent=39 // pred_region
          %278 = dma.done %s271, 512
        $region44: #{tpu_custom_call.1} parent=39 // pred_fallthru
          _
        %s279 = sand.u32 %s25, 1
        %s280 = scalar_lea.sflag [#allocation6], %s279
        %s281 = sand.u32 %s75, 1
        %s282 = smul.addr %s281, 32
        %s283 = scalar_lea.vmem [#allocation5], %s282
        // Predicated region
        $region45: #{tpu_custom_call.1} parent=39 // pred_check
          %p284 = pneg %p88
        $region46: #{tpu_custom_call.1} parent=39 // pred_check_branch
          %286 = sbr.rel (%p284) target = $region48
        $region47: #{tpu_custom_call.1} parent=39 // pred_region
          %287 = dma.done %s280, 512
        $region48: #{tpu_custom_call.1} parent=39 // pred_fallthru
          _
        // Predicated region
        $region49: #{tpu_custom_call.1} parent=39 // pred_check
          %p288 = pneg %p130
        $region50: #{tpu_custom_call.1} parent=39 // pred_check_branch
          %290 = sbr.rel (%p288) target = $region52
        $region51: #{tpu_custom_call.1} parent=39 // pred_region
          %291 = dma.done [#allocation6], 256
        $region52: #{tpu_custom_call.1} parent=39 // pred_fallthru
          _
        %s292 = sand.u32 %s47, 1
        %s293 = scalar_lea.sflag [#allocation3], %s292
        %s294 = sand.u32 %s47, 1
        %s295 = smul.addr %s294, 32
        %s296 = scalar_lea.vmem [#allocation2], %s295
        %p297 = pneg %p60
        %p298 = pneg %p57
        %s299 = sand.u32 %s25, 1
        %s300 = scalar_lea.sflag [#allocation6], %s299
        %s301 = sand.u32 %s75, 1
        %s302 = smul.addr %s301, 32
        %s303 = scalar_lea.vmem [#allocation5], %s302
        %p304 = pneg %p88
        %p305 = pneg %p85
        %p306 = pneg %p109
        %p307 = pneg %p106
        %p308 = pneg %p130
        %p309 = pneg %p127
        %p310 = pneg %p151
        %p311 = pneg %p148
        %p312 = pneg %p179
        %p313 = pneg %p176
        %s314 = sand.u32 %s166, 1
        %s315 = scalar_lea.sflag [#allocation4], %s314
        %s316 = sand.u32 %s166, 1
        %s317 = smul.addr %s316, 32
        %s318 = scalar_lea.vmem [#allocation8], %s317
        %s319 = smul.u32 2, %s30
        %s320 = smul.u32 2, %s30
        %s321 = smul.u32 2, %s30
        %v322 = vld [vmem:[%s2] sm:$0xff]
        %v323 = vld [vmem:[%s2 + $0x8] sm:$0xff]
        %v324 = vld [vmem:[%s274] sm:$0xff]
        %v325 = vld [vmem:[%s274 + $0x8] sm:$0xff]
        %v326 = vld [vmem:[%s274 + $0x10] sm:$0xff]
        %v327 = vld [vmem:[%s274 + $0x18] sm:$0xff]
        %v328 = vld [vmem:[#allocation7] sm:$0xff]
        %v329 = vld [vmem:[#allocation7 + $0x8] sm:$0xff]
        %v330 = vld [vmem:[%s283] sm:$0xff]
        %v331 = vld [vmem:[%s283 + $0x8] sm:$0xff]
        %v332 = vld [vmem:[%s283 + $0x10] sm:$0xff]
        %v333 = vld [vmem:[%s283 + $0x18] sm:$0xff]
        %vm334 = vcmask 130048
        %v336 = vsel %vm334, %v328, 0
        %v339 = vsel %vm334, %v329, 0
        %341 = vmatprep.subr.mxu0 %v331
        %342 = vmatpush1.msra.mxu0 %v330
        %343 = vmatprep.subr.mxu0 %v333
        %344 = vmatpush1.msra.mxu0 %v332
        %345 = vmatprep.subr.mxu0 0.0
        %346 = vmatpush1.msra.mxu0 0.0
        %347 = vmatprep.subr.mxu0 0.0
        %348 = vmatpush1.msra.mxu0 0.0
        %349 = vmatprep.subr.mxu0 0.0
        %350 = vmatpush1.msra.mxu0 0.0
        %351 = vmatprep.subr.mxu0 0.0
        %352 = vmatpush1.msra.mxu0 0.0
        %353 = vmatprep.subr.mxu0 0.0
        %354 = vmatpush1.msra.mxu0 0.0
        %355 = vmatprep.subr.mxu0 0.0
        %356 = vmatpush1.msra.mxu0 0.0
        %357 = vmatprep.subr.mxu0 0.0
        %358 = vmatpush1.msra.mxu0 0.0
        %359 = vmatprep.subr.mxu0 0.0
        %360 = vmatpush1.msra.mxu0 0.0
        %361 = vmatprep.subr.mxu0 0.0
        %362 = vmatpush1.msra.mxu0 0.0
        %363 = vmatprep.subr.mxu0 0.0
        %364 = vmatpush1.msra.mxu0 0.0
        %365 = vmatprep.subr.mxu0 0.0
        %366 = vmatpush1.msra.mxu0 0.0
        %367 = vmatprep.subr.mxu0 0.0
        %368 = vmatpush1.msra.mxu0 0.0
        %369 = vmatprep.subr.mxu0 0.0
        %370 = vmatpush1.msra.mxu0 0.0
        %371 = vmatprep.subr.mxu0 0.0
        %372 = vmatpush1.msra.mxu0 0.0
        %373 = vmatprep.subr.mxu0 0.0
        %374 = vmatpush1.msra.mxu0 0.0
        %375 = vmatprep.subr.mxu0 0.0
        %376 = vmatpush1.msra.mxu0 0.0
        %377 = vmatprep.subr.mxu0 0.0
        %378 = vmatpush1.msra.mxu0 0.0
        %379 = vmatprep.subr.mxu0 0.0
        %380 = vmatpush1.msra.mxu0 0.0
        %381 = vmatprep.subr.mxu0 0.0
        %382 = vmatpush1.msra.mxu0 0.0
        %383 = vmatprep.subr.mxu0 0.0
        %384 = vmatpush1.msra.mxu0 0.0
        %385 = vmatprep.subr.mxu0 0.0
        %386 = vmatpush1.msra.mxu0 0.0
        %387 = vmatprep.subr.mxu0 0.0
        %388 = vmatpush1.msra.mxu0 0.0
        %389 = vmatprep.subr.mxu0 0.0
        %390 = vmatpush1.msra.mxu0 0.0
        %391 = vmatprep.subr.mxu0 0.0
        %392 = vmatpush1.msra.mxu0 0.0
        %393 = vmatprep.subr.mxu0 0.0
        %394 = vmatpush1.msra.mxu0 0.0
        %395 = vmatprep.subr.mxu0 0.0
        %396 = vmatpush1.msra.mxu0 0.0
        %397 = vmatprep.subr.mxu0 0.0
        %398 = vmatpush1.msra.mxu0 0.0
        %399 = vmatprep.subr.mxu0 0.0
        %400 = vmatpush1.msra.mxu0 0.0
        %401 = vmatprep.subr.mxu0 0.0
        %402 = vmatpush1.msra.mxu0 0.0
        %403 = vmatprep.subr.mxu0 0.0
        %404 = vmatpush1.msra.mxu0 0.0
        %405 = vmatprep.mubr.f32.mxu0 0.0
        %406 = vmatmul.mubr.f32.gmra.mrb[0].mxu0 %v336
        %v407 = vpop.f32.mrb[0].mxu0
        %v408 = vadd.f32 0.0, %v407
        %v409 = vpop.f32.mrb[0].mxu0
        %v410 = vadd.f32 0.0, %v409
        %411 = vmatprep.mubr.f32.mxu0 0.0
        %412 = vmatmul.mubr.f32.gmra.mrb[0].mxu0 %v339
        %v413 = vpop.f32.mrb[0].mxu0
        %v414 = vadd.f32 0.0, %v413
        %v415 = vpop.f32.mrb[0].mxu0
        %v416 = vadd.f32 0.0, %v415
        %417 = vdwg.mxu0
        %v419 = vsel %vm334, %v322, 0
        %v422 = vsel %vm334, %v323, 0
        %424 = vmatprep.subr.mxu0 %v325
        %425 = vmatpush1.msra.mxu0 %v324
        %426 = vmatprep.subr.mxu0 %v327
        %427 = vmatpush1.msra.mxu0 %v326
        %428 = vmatprep.subr.mxu0 0.0
        %429 = vmatpush1.msra.mxu0 0.0
        %430 = vmatprep.subr.mxu0 0.0
        %431 = vmatpush1.msra.mxu0 0.0
        %432 = vmatprep.subr.mxu0 0.0
        %433 = vmatpush1.msra.mxu0 0.0
        %434 = vmatprep.subr.mxu0 0.0
        %435 = vmatpush1.msra.mxu0 0.0
        %436 = vmatprep.subr.mxu0 0.0
        %437 = vmatpush1.msra.mxu0 0.0
        %438 = vmatprep.subr.mxu0 0.0
        %439 = vmatpush1.msra.mxu0 0.0
        %440 = vmatprep.subr.mxu0 0.0
        %441 = vmatpush1.msra.mxu0 0.0
        %442 = vmatprep.subr.mxu0 0.0
        %443 = vmatpush1.msra.mxu0 0.0
        %444 = vmatprep.subr.mxu0 0.0
        %445 = vmatpush1.msra.mxu0 0.0
        %446 = vmatprep.subr.mxu0 0.0
        %447 = vmatpush1.msra.mxu0 0.0
        %448 = vmatprep.subr.mxu0 0.0
        %449 = vmatpush1.msra.mxu0 0.0
        %450 = vmatprep.subr.mxu0 0.0
        %451 = vmatpush1.msra.mxu0 0.0
        %452 = vmatprep.subr.mxu0 0.0
        %453 = vmatpush1.msra.mxu0 0.0
        %454 = vmatprep.subr.mxu0 0.0
        %455 = vmatpush1.msra.mxu0 0.0
        %456 = vmatprep.subr.mxu0 0.0
        %457 = vmatpush1.msra.mxu0 0.0
        %458 = vmatprep.subr.mxu0 0.0
        %459 = vmatpush1.msra.mxu0 0.0
        %460 = vmatprep.subr.mxu0 0.0
        %461 = vmatpush1.msra.mxu0 0.0
        %462 = vmatprep.subr.mxu0 0.0
        %463 = vmatpush1.msra.mxu0 0.0
        %464 = vmatprep.subr.mxu0 0.0
        %465 = vmatpush1.msra.mxu0 0.0
        %466 = vmatprep.subr.mxu0 0.0
        %467 = vmatpush1.msra.mxu0 0.0
        %468 = vmatprep.subr.mxu0 0.0
        %469 = vmatpush1.msra.mxu0 0.0
        %470 = vmatprep.subr.mxu0 0.0
        %471 = vmatpush1.msra.mxu0 0.0
        %472 = vmatprep.subr.mxu0 0.0
        %473 = vmatpush1.msra.mxu0 0.0
        %474 = vmatprep.subr.mxu0 0.0
        %475 = vmatpush1.msra.mxu0 0.0
        %476 = vmatprep.subr.mxu0 0.0
        %477 = vmatpush1.msra.mxu0 0.0
        %478 = vmatprep.subr.mxu0 0.0
        %479 = vmatpush1.msra.mxu0 0.0
        %480 = vmatprep.subr.mxu0 0.0
        %481 = vmatpush1.msra.mxu0 0.0
        %482 = vmatprep.subr.mxu0 0.0
        %483 = vmatpush1.msra.mxu0 0.0
        %484 = vmatprep.subr.mxu0 0.0
        %485 = vmatpush1.msra.mxu0 0.0
        %486 = vmatprep.subr.mxu0 0.0
        %487 = vmatpush1.msra.mxu0 0.0
        %488 = vmatprep.mubr.f32.mxu0 0.0
        %489 = vmatmul.mubr.f32.gmra.mrb[0].mxu0 %v419
        %v490 = vpop.f32.mrb[0].mxu0
        %v491 = vadd.f32 %v408, %v490
        %v492 = vpop.f32.mrb[0].mxu0
        %v493 = vadd.f32 %v410, %v492
        %494 = vmatprep.mubr.f32.mxu0 0.0
        %495 = vmatmul.mubr.f32.gmra.mrb[0].mxu0 %v422
        %v496 = vpop.f32.mrb[0].mxu0
        %v497 = vadd.f32 %v414, %v496
        %v498 = vpop.f32.mrb[0].mxu0
        %v499 = vadd.f32 %v416, %v498
        %500 = vdwg.mxu0
        %v501 = vld [vmem:[%s4] sm:$0xff]
        %v502 = vld [vmem:[%s4 + $0x8] sm:$0xff]
        %504 = vset.pattern.permute.xlu0 0
        %505 = vperm.xlu0 %504, %v501
        %v506 = vpop.permute.xlu0 %505
        %509 = vset.pattern.permute.xlu0 0
        %510 = vperm.xlu0 %509, %v502
        %v511 = vpop.permute.xlu0 %510
        %v513 = vadd.f32 %v491, %v506
        %v514 = vadd.f32 %v493, %v506
        %v515 = vadd.f32 %v497, %v511
        %v516 = vadd.f32 %v499, %v511
        %517 = vst [vmem:[%s318] sm:$0xff] %v513
        %518 = vst [vmem:[%s318 + $0x8] sm:$0xff] %v514
        %519 = vst [vmem:[%s318 + $0x10] sm:$0xff] %v515
        %520 = vst [vmem:[%s318 + $0x18] sm:$0xff] %v516
        %s521 = sand.u32 %s166, 1
        %s522 = scalar_lea.sflag [#allocation4], %s521
        %s523 = sand.u32 %s166, 1
        %s524 = smul.addr %s523, 32
        %s525 = scalar_lea.vmem [#allocation8], %s524
        // Predicated region
        $region53: #{tpu_custom_call.1} parent=39 // pred_check
          %p526 = pneg %p176
        $region54: #{tpu_custom_call.1} parent=39 // pred_check_branch
          %528 = sbr.rel (%p526) target = $region56
        $region55: #{tpu_custom_call.1} parent=39 // pred_region
          %s529 = smul.u32 2, %s30
          %s531 = ssub.s32 512, 512
          %532 = vsyncadd %s522, %s531
          %s533 = smul.addr %s29, 4
          %s534 = sadd.s32 %s529, %s533
          %s535 = smul.addr %s534, 128
          %s536 = scalar_lea.hbm %s5, %s535
          %s537 = sshll.u32 %s525, 4
          %s538 = int_to_ptr.vmem [resolvable:$true] %s537
          %543 = dma.vmem_to_hbm [thread:$0]  %s538, 512, %s536, %s522, 256, 256, 16
        $region56: #{tpu_custom_call.1} parent=39 // pred_fallthru
          _
      $region40: #{tpu_custom_call.1} parent=5 // pred_fallthru
        _
      %p544 = scmp.le.s32.totalorder 2, %s20
      // Predicated region
      $region57: #{tpu_custom_call.1} parent=5 // pred_check
        %p545 = pneg %p544
      $region58: #{tpu_custom_call.1} parent=5 // pred_check_branch
        %547 = sbr.rel (%p545) target = $region60
      $region59: #{tpu_custom_call.1} parent=5 // pred_region
        %s548 = ssub.s32 %s20, 2
        // Predicated region
        $region61: #{tpu_custom_call.1} parent=59 // pred_check
          %p549 = pneg %p182
        $region62: #{tpu_custom_call.1} parent=59 // pred_check_branch
          %551 = sbr.rel (%p549) target = $region64
        $region63: #{tpu_custom_call.1} parent=59 // pred_region
          %s552 = sand.u32 %s167, 1
          %s553 = scalar_lea.sflag [#allocation4], %s552
          %s554 = sand.u32 %s167, 1
          %s555 = smul.addr %s554, 32
          %s556 = scalar_lea.vmem [#allocation8], %s555
          %557 = dma.done %s553, 512
        $region64: #{tpu_custom_call.1} parent=59 // pred_fallthru
          _
      $region60: #{tpu_custom_call.1} parent=5 // pred_fallthru
        _
    $region6: #{tpu_custom_call.1} parent=1 // loop_footer
      %s24 = sadd.s32 1, %s20
    $region7: #{tpu_custom_call.1} parent=1 // loop_footer_branch
      %19 = sbr.rel target = $region3
    $region8: #{tpu_custom_call.1} parent=1 // loop_exit
      _
    %558 = vsyncpa [#allocation3], 1
    %s559 = scalar_lea.sflag [#allocation3], 1
    %560 = vsyncpa %s559, 1
    %561 = vsyncpa [#allocation6], 1
    %s562 = scalar_lea.sflag [#allocation6], 1
    %563 = vsyncpa %s562, 1
    %564 = vsyncpa [#allocation4], 1
    %s565 = scalar_lea.sflag [#allocation4], 1
    %566 = vsyncpa %s565, 1

// kernel: tpu_custom_call.1
$region0: #{tpu_custom_call.1}
  #allocation0 [shape = 'u32[]', space=smem, size = 0x4, offset = 0x4, fixed_abs, tag = 'smem constant byte address 0x4 - core index']
  #allocation1 [shape = 'u32[144,128]{1,0:T(1,128)}', space=vmem, size = 0x12000, scoped, tag = 'internal scratch']
  %s0 = inlined_call_operand.hbm [shape: f32[2,16,256], index: 0, kind: input, shape index: {}]
  %s1 = inlined_call_operand.hbm [shape: f32[2,16,256], index: 1, kind: input, shape index: {}]
  %s2 = inlined_call_operand.vmem [shape: f32[16,16], index: 2, kind: input, shape index: {}]
  %s3 = inlined_call_operand.hbm [shape: f32[16,16], index: 3, kind: input, shape index: {}]
  %s4 = inlined_call_operand.vmem [shape: f32[16,1], index: 4, kind: input, shape index: {}]
  %s5 = inlined_call_operand.hbm [shape: f32[2,16,256], index: 5, kind: output, shape index: {}]
  %s6 = sld [smem:[#allocation0]]
  $region65: #{tpu_custom_call.1} parent=0
    _
  %s8 = ssub.s32 1, %s6
  %s9 = scalar_select 0, %s8, %s6
  $region1: #{tpu_custom_call.1} parent=0
    #allocation2 [shape = 'u8[32768]{0}', space=vmem, size = 0x8000, scoped, tag = 'input window, operand 0']
    #allocation3 [shape = 's32[2]{0}', space=sflag, size = 0x8, scoped, tag = 'scoped memory for tpu_custom_call.1']
    #allocation4 [shape = 's32[2]{0}', space=sflag, size = 0x8, scoped, tag = 'scoped memory for tpu_custom_call.1']
    #allocation5 [shape = 'u8[32768]{0}', space=vmem, size = 0x8000, scoped, tag = 'input window, operand 1']
    #allocation6 [shape = 's32[2]{0}', space=sflag, size = 0x8, scoped, tag = 'scoped memory for tpu_custom_call.1']
    #allocation7 [shape = 'u8[8192]{0}', space=vmem, size = 0x2000, scoped, tag = 'input window, operand 3, single buffered']
    #allocation8 [shape = 'u8[32768]{0}', space=vmem, size = 0x8000, scoped, tag = 'output window, operand 0']
    %10 = vsyncpa [#allocation3], 0
    %s11 = scalar_lea.sflag [#allocation3], 1
    %12 = vsyncpa %s11, 0
    %13 = vsyncpa [#allocation6], 0
    %s14 = scalar_lea.sflag [#allocation6], 1
    %15 = vsyncpa %s14, 0
    %16 = vsyncpa [#allocation4], 0
    %s17 = scalar_lea.sflag [#allocation4], 1
    %18 = vsyncpa %s17, 0
    loop: start=0, step=1, limit=4
    $region2: #{tpu_custom_call.1} parent=1 // loop_pre_header
      _
    $region3: #{tpu_custom_call.1} parent=1 // loop_header
      %s20 = sphi 0, %s24
      %p21 = scmp.ge.s32.totalorder %s20, 4
      %s27 = sphi 0, %s39
      %s28 = sphi 0, %s35
      %s29 = sphi 0, %s27
      %s30 = sphi 0, %s28
      %s31 = sphi 0, %s29
      %s32 = sphi 0, %s30
      %s44 = sphi 0, %s46
      %s47 = sphi 0, %s44
      %s48 = sphi 0, %s47
      %s64 = sphi 0, %s48
      %s72 = sphi 0, %s74
      %s75 = sphi 0, %s72
      %s76 = sphi 0, %s75
      %s92 = sphi 0, %s76
      %s96 = sphi 0, %s96
      %s98 = sphi 0, %s96
      %s99 = sphi 0, %s98
      %s113 = sphi 0, %s99
      %s117 = sphi 0, %s117
      %s119 = sphi 0, %s117
      %s120 = sphi 0, %s119
      %s134 = sphi 0, %s120
      %s138 = sphi 0, %s138
      %s140 = sphi 0, %s138
      %s141 = sphi 0, %s140
      %s155 = sphi 0, %s141
      %s163 = sphi 0, %s165
      %s166 = sphi 0, %s163
      %s167 = sphi 0, %s166
      %s183 = sphi 0, %s167
    $region4: #{tpu_custom_call.1} parent=1 // loop_header_branch
      %23 = sbr.rel (%p21) target = $region8
    $region5: #{tpu_custom_call.1} parent=1 // loop_body
      %s25 = ssub.s32 %s20, 1
      %s26 = ssub.s32 %s20, 2
      %s33 = sadd.s32 1, %s28
      %p34 = scmp.ge.s32.totalorder %s33, 1
      %s35 = scalar_select %p34, 0, %s33
      %s36 = sadd.s32 1, %s27
      %s37 = scalar_select %p34, %s36, %s27
      %p38 = scmp.ge.s32.totalorder %s37, 2
      %s39 = scalar_select %p38, 0, %s37
      %s40 = ssub.s32 %s27, %s39
      %s41 = ssub.s32 %s28, %s35
      %s42 = sor.u32 %s40, %s41
      %p43 = scmp.eq.s32.totalorder %s42, 0
      %s45 = sadd.s32 %s44, 1
      %s46 = scalar_select %p43, %s44, %s45
      %p49 = pneg %p43
      %p50 = scmp.eq.s32.totalorder %s20, 1
      %p51 = por %p49, %p50
      %p52 = scmp.ne.s32.totalorder %s44, %s47
      %p53 = scmp.eq.s32.totalorder %s20, 0
      %p54 = por %p52, %p53
      %p55 = scmp.ne.s32.totalorder %s44, %s47
      %p56 = scmp.eq.s32.totalorder %s25, 1
      %p57 = por %p55, %p56
      %p58 = scmp.ne.s32.totalorder %s47, %s48
      %p59 = scmp.eq.s32.totalorder %s25, 0
      %p60 = por %p58, %p59
      %p61 = scmp.ne.s32.totalorder %s47, %s48
      %p62 = scmp.eq.s32.totalorder %s26, 1
      %p63 = por %p61, %p62
      %p65 = scmp.ne.s32.totalorder %s48, %s64
      %p66 = scmp.eq.s32.totalorder %s26, 0
      %p67 = por %p65, %p66
      %s68 = ssub.s32 %s27, %s39
      %s69 = ssub.s32 %s28, %s35
      %s70 = sor.u32 %s68, %s69
      %p71 = scmp.eq.s32.totalorder %s70, 0
      %s73 = sadd.s32 %s72, 1
      %s74 = scalar_select %p71, %s72, %s73
      %p77 = pneg %p71
      %p78 = scmp.eq.s32.totalorder %s20, 1
      %p79 = por %p77, %p78
      %p80 = scmp.ne.s32.totalorder %s72, %s75
      %p81 = scmp.eq.s32.totalorder %s20, 0
      %p82 = por %p80, %p81
      %p83 = scmp.ne.s32.totalorder %s72, %s75
      %p84 = scmp.eq.s32.totalorder %s25, 1
      %p85 = por %p83, %p84
      %p86 = scmp.ne.s32.totalorder %s75, %s76
      %p87 = scmp.eq.s32.totalorder %s25, 0
      %p88 = por %p86, %p87
      %p89 = scmp.ne.s32.totalorder %s75, %s76
      %p90 = scmp.eq.s32.totalorder %s26, 1
      %p91 = por %p89, %p90
      %p93 = scmp.ne.s32.totalorder %s76, %s92
      %p94 = scmp.eq.s32.totalorder %s26, 0
      %p95 = por %p93, %p94
      %s97 = sadd.s32 %s96, 1
      %p100 = scmp.eq.s32.totalorder %s20, 1
      %p101 = scmp.ne.s32.totalorder %s96, %s98
      %p102 = scmp.eq.s32.totalorder %s20, 0
      %p103 = por %p101, %p102
      %p104 = scmp.ne.s32.totalorder %s96, %s98
      %p105 = scmp.eq.s32.totalorder %s25, 1
      %p106 = por %p104, %p105
      %p107 = scmp.ne.s32.totalorder %s98, %s99
      %p108 = scmp.eq.s32.totalorder %s25, 0
      %p109 = por %p107, %p108
      %p110 = scmp.ne.s32.totalorder %s98, %s99
      %p111 = scmp.eq.s32.totalorder %s26, 1
      %p112 = por %p110, %p111
      %p114 = scmp.ne.s32.totalorder %s99, %s113
      %p115 = scmp.eq.s32.totalorder %s26, 0
      %p116 = por %p114, %p115
      %s118 = sadd.s32 %s117, 1
      %p121 = scmp.eq.s32.totalorder %s20, 1
      %p122 = scmp.ne.s32.totalorder %s117, %s119
      %p123 = scmp.eq.s32.totalorder %s20, 0
      %p124 = por %p122, %p123
      %p125 = scmp.ne.s32.totalorder %s117, %s119
      %p126 = scmp.eq.s32.totalorder %s25, 1
      %p127 = por %p125, %p126
      %p128 = scmp.ne.s32.totalorder %s119, %s120
      %p129 = scmp.eq.s32.totalorder %s25, 0
      %p130 = por %p128, %p129
      %p131 = scmp.ne.s32.totalorder %s119, %s120
      %p132 = scmp.eq.s32.totalorder %s26, 1
      %p133 = por %p131, %p132
      %p135 = scmp.ne.s32.totalorder %s120, %s134
      %p136 = scmp.eq.s32.totalorder %s26, 0
      %p137 = por %p135, %p136
      %s139 = sadd.s32 %s138, 1
      %p142 = scmp.eq.s32.totalorder %s20, 1
      %p143 = scmp.ne.s32.totalorder %s138, %s140
      %p144 = scmp.eq.s32.totalorder %s20, 0
      %p145 = por %p143, %p144
      %p146 = scmp.ne.s32.totalorder %s138, %s140
      %p147 = scmp.eq.s32.totalorder %s25, 1
      %p148 = por %p146, %p147
      %p149 = scmp.ne.s32.totalorder %s140, %s141
      %p150 = scmp.eq.s32.totalorder %s25, 0
      %p151 = por %p149, %p150
      %p152 = scmp.ne.s32.totalorder %s140, %s141
      %p153 = scmp.eq.s32.totalorder %s26, 1
      %p154 = por %p152, %p153
      %p156 = scmp.ne.s32.totalorder %s141, %s155
      %p157 = scmp.eq.s32.totalorder %s26, 0
      %p158 = por %p156, %p157
      %s159 = ssub.s32 %s27, %s39
      %s160 = ssub.s32 %s28, %s35
      %s161 = sor.u32 %s159, %s160
      %p162 = scmp.eq.s32.totalorder %s161, 0
      %s164 = sadd.s32 %s163, 1
      %s165 = scalar_select %p162, %s163, %s164
      %p168 = pneg %p162
      %p169 = scmp.eq.s32.totalorder %s20, 1
      %p170 = por %p168, %p169
      %p171 = scmp.ne.s32.totalorder %s163, %s166
      %p172 = scmp.eq.s32.totalorder %s20, 0
      %p173 = por %p171, %p172
      %p174 = scmp.ne.s32.totalorder %s163, %s166
      %p175 = scmp.eq.s32.totalorder %s25, 1
      %p176 = por %p174, %p175
      %p177 = scmp.ne.s32.totalorder %s166, %s167
      %p178 = scmp.eq.s32.totalorder %s25, 0
      %p179 = por %p177, %p178
      %p180 = scmp.ne.s32.totalorder %s166, %s167
      %p181 = scmp.eq.s32.totalorder %s26, 1
      %p182 = por %p180, %p181
      %p184 = scmp.ne.s32.totalorder %s167, %s183
      %p185 = scmp.eq.s32.totalorder %s26, 0
      %p186 = por %p184, %p185
      %p187 = scmp.le.s32.totalorder 1, %s20
      %p188 = scmp.lt.s32.totalorder %s20, 3
      %p189 = pnand %p187, %p188
      %p190 = pneg %p189
      // Predicated region
      $region9: #{tpu_custom_call.1} parent=5 // pred_check
        _
      $region10: #{tpu_custom_call.1} parent=5 // pred_check_branch
        %192 = sbr.rel (%p189) target = $region12
      $region11: #{tpu_custom_call.1} parent=5 // pred_region
        %s193 = ssub.s32 %s20, 1
        // Predicated region
        $region13: #{tpu_custom_call.1} parent=11 // pred_check
          %p194 = pneg %p109
        $region14: #{tpu_custom_call.1} parent=11 // pred_check_branch
          %196 = sbr.rel (%p194) target = $region16
        $region15: #{tpu_custom_call.1} parent=11 // pred_region
          _
        $region16: #{tpu_custom_call.1} parent=11 // pred_fallthru
          _
        // Predicated region
        $region17: #{tpu_custom_call.1} parent=11 // pred_check
          %p197 = pneg %p130
        $region18: #{tpu_custom_call.1} parent=11 // pred_check_branch
          %199 = sbr.rel (%p197) target = $region20
        $region19: #{tpu_custom_call.1} parent=11 // pred_region
          %s201 = ssub.s32 256, 256
          %202 = vsyncadd [#allocation6], %s201
          %s203 = sshll.u32 [#allocation7], 4
          %s204 = int_to_ptr.vmem [resolvable:$true] %s203
          %209 = dma.hbm_to_vmem [thread:$0]  %s3, 256, %s204, [#allocation6], 128, 128, 8
        $region20: #{tpu_custom_call.1} parent=11 // pred_fallthru
          _
        // Predicated region
        $region21: #{tpu_custom_call.1} parent=11 // pred_check
          %p210 = pneg %p151
        $region22: #{tpu_custom_call.1} parent=11 // pred_check_branch
          %212 = sbr.rel (%p210) target = $region24
        $region23: #{tpu_custom_call.1} parent=11 // pred_region
          _
        $region24: #{tpu_custom_call.1} parent=11 // pred_fallthru
          _
      $region12: #{tpu_custom_call.1} parent=5 // pred_fallthru
        _
      %p213 = scmp.lt.s32.totalorder %s20, 2
      // Predicated region
      $region25: #{tpu_custom_call.1} parent=5 // pred_check
        %p214 = pneg %p213
      $region26: #{tpu_custom_call.1} parent=5 // pred_check_branch
        %216 = sbr.rel (%p214) target = $region28
      $region27: #{tpu_custom_call.1} parent=5 // pred_region
        // Predicated region
        $region29: #{tpu_custom_call.1} parent=27 // pred_check
          %p217 = pneg %p54
        $region30: #{tpu_custom_call.1} parent=27 // pred_check_branch
          %219 = sbr.rel (%p217) target = $region32
        $region31: #{tpu_custom_call.1} parent=27 // pred_region
          %s220 = sand.u32 %s44, 1
          %s221 = scalar_lea.sflag [#allocation3], %s220
          %s222 = sand.u32 %s44, 1
          %s223 = smul.addr %s222, 32
          %s224 = scalar_lea.vmem [#allocation2], %s223
          %s225 = smul.u32 2, %s28
          %s227 = ssub.s32 512, 512
          %228 = vsyncadd %s221, %s227
          %s229 = smul.addr %s27, 4
          %s230 = sadd.s32 %s225, %s229
          %s231 = smul.addr %s230, 128
          %s232 = scalar_lea.hbm %s0, %s231
          %s233 = sshll.u32 %s224, 4
          %s234 = int_to_ptr.vmem [resolvable:$true] %s233
          %239 = dma.hbm_to_vmem [thread:$0]  %s232, 512, %s234, %s221, 256, 256, 16
        $region32: #{tpu_custom_call.1} parent=27 // pred_fallthru
          _
        // Predicated region
        $region33: #{tpu_custom_call.1} parent=27 // pred_check
          %p240 = pneg %p82
        $region34: #{tpu_custom_call.1} parent=27 // pred_check_branch
          %242 = sbr.rel (%p240) target = $region36
        $region35: #{tpu_custom_call.1} parent=27 // pred_region
          %s243 = sand.u32 %s20, 1
          %s244 = scalar_lea.sflag [#allocation6], %s243
          %s245 = sand.u32 %s72, 1
          %s246 = smul.addr %s245, 32
          %s247 = scalar_lea.vmem [#allocation5], %s246
          %s248 = smul.u32 2, %s28
          %s250 = ssub.s32 512, 512
          %251 = vsyncadd %s244, %s250
          %s252 = smul.addr %s27, 4
          %s253 = sadd.s32 %s248, %s252
          %s254 = smul.addr %s253, 128
          %s255 = scalar_lea.hbm %s1, %s254
          %s256 = sshll.u32 %s247, 4
          %s257 = int_to_ptr.vmem [resolvable:$true] %s256
          %262 = dma.hbm_to_vmem [thread:$0]  %s255, 512, %s257, %s244, 256, 256, 16
        $region36: #{tpu_custom_call.1} parent=27 // pred_fallthru
          _
      $region28: #{tpu_custom_call.1} parent=5 // pred_fallthru
        _
      %p263 = scmp.le.s32.totalorder 1, %s20
      %p264 = scmp.lt.s32.totalorder %s20, 3
      %p265 = pnand %p263, %p264
      %p266 = pneg %p265
      // Predicated region
      $region37: #{tpu_custom_call.1} parent=5 // pred_check
        _
      $region38: #{tpu_custom_call.1} parent=5 // pred_check_branch
        %268 = sbr.rel (%p265) target = $region40
      $region39: #{tpu_custom_call.1} parent=5 // pred_region
        %s269 = ssub.s32 %s20, 1
        %s270 = sand.u32 %s47, 1
        %s271 = scalar_lea.sflag [#allocation3], %s270
        %s272 = sand.u32 %s47, 1
        %s273 = smul.addr %s272, 32
        %s274 = scalar_lea.vmem [#allocation2], %s273
        // Predicated region
        $region41: #{tpu_custom_call.1} parent=39 // pred_check
          %p275 = pneg %p60
        $region42: #{tpu_custom_call.1} parent=39 // pred_check_branch
          %277 = sbr.rel (%p275) target = $region44
        $region43: #{tpu_custom_call.1} parent=39 // pred_region
          %278 = dma.done %s271, 512
        $region44: #{tpu_custom_call.1} parent=39 // pred_fallthru
          _
        %s279 = sand.u32 %s25, 1
        %s280 = scalar_lea.sflag [#allocation6], %s279
        %s281 = sand.u32 %s75, 1
        %s282 = smul.addr %s281, 32
        %s283 = scalar_lea.vmem [#allocation5], %s282
        // Predicated region
        $region45: #{tpu_custom_call.1} parent=39 // pred_check
          %p284 = pneg %p88
        $region46: #{tpu_custom_call.1} parent=39 // pred_check_branch
          %286 = sbr.rel (%p284) target = $region48
        $region47: #{tpu_custom_call.1} parent=39 // pred_region
          %287 = dma.done %s280, 512
        $region48: #{tpu_custom_call.1} parent=39 // pred_fallthru
          _
        // Predicated region
        $region49: #{tpu_custom_call.1} parent=39 // pred_check
          %p288 = pneg %p130
        $region50: #{tpu_custom_call.1} parent=39 // pred_check_branch
          %290 = sbr.rel (%p288) target = $region52
        $region51: #{tpu_custom_call.1} parent=39 // pred_region
          %291 = dma.done [#allocation6], 256
        $region52: #{tpu_custom_call.1} parent=39 // pred_fallthru
          _
        %s292 = sand.u32 %s47, 1
        %s293 = scalar_lea.sflag [#allocation3], %s292
        %s294 = sand.u32 %s47, 1
        %s295 = smul.addr %s294, 32
        %s296 = scalar_lea.vmem [#allocation2], %s295
        %p297 = pneg %p60
        %p298 = pneg %p57
        %s299 = sand.u32 %s25, 1
        %s300 = scalar_lea.sflag [#allocation6], %s299
        %s301 = sand.u32 %s75, 1
        %s302 = smul.addr %s301, 32
        %s303 = scalar_lea.vmem [#allocation5], %s302
        %p304 = pneg %p88
        %p305 = pneg %p85
        %p306 = pneg %p109
        %p307 = pneg %p106
        %p308 = pneg %p130
        %p309 = pneg %p127
        %p310 = pneg %p151
        %p311 = pneg %p148
        %p312 = pneg %p179
        %p313 = pneg %p176
        %s314 = sand.u32 %s166, 1
        %s315 = scalar_lea.sflag [#allocation4], %s314
        %s316 = sand.u32 %s166, 1
        %s317 = smul.addr %s316, 32
        %s318 = scalar_lea.vmem [#allocation8], %s317
        %s319 = smul.u32 2, %s30
        %s320 = smul.u32 2, %s30
        %s321 = smul.u32 2, %s30
        %v322 = vld [vmem:[%s2] sm:$0xff]
        %v323 = vld [vmem:[%s2 + $0x8] sm:$0xff]
        %v324 = vld [vmem:[%s274] sm:$0xff]
        %v325 = vld [vmem:[%s274 + $0x8] sm:$0xff]
        %v326 = vld [vmem:[%s274 + $0x10] sm:$0xff]
        %v327 = vld [vmem:[%s274 + $0x18] sm:$0xff]
        %v328 = vld [vmem:[#allocation7] sm:$0xff]
        %v329 = vld [vmem:[#allocation7 + $0x8] sm:$0xff]
        %v330 = vld [vmem:[%s283] sm:$0xff]
        %v331 = vld [vmem:[%s283 + $0x8] sm:$0xff]
        %v332 = vld [vmem:[%s283 + $0x10] sm:$0xff]
        %v333 = vld [vmem:[%s283 + $0x18] sm:$0xff]
        %vm334 = vcmask 130048
        %v336 = vsel %vm334, %v328, 0
        %v339 = vsel %vm334, %v329, 0
        %341 = vmatprep.subr.mxu0 %v331
        %342 = vmatpush1.msra.mxu0 %v330
        %343 = vmatprep.subr.mxu0 %v333
        %344 = vmatpush1.msra.mxu0 %v332
        %345 = vmatprep.subr.mxu0 0.0
        %346 = vmatpush1.msra.mxu0 0.0
        %347 = vmatprep.subr.mxu0 0.0
        %348 = vmatpush1.msra.mxu0 0.0
        %349 = vmatprep.subr.mxu0 0.0
        %350 = vmatpush1.msra.mxu0 0.0
        %351 = vmatprep.subr.mxu0 0.0
        %352 = vmatpush1.msra.mxu0 0.0
        %353 = vmatprep.subr.mxu0 0.0
        %354 = vmatpush1.msra.mxu0 0.0
        %355 = vmatprep.subr.mxu0 0.0
        %356 = vmatpush1.msra.mxu0 0.0
        %357 = vmatprep.subr.mxu0 0.0
        %358 = vmatpush1.msra.mxu0 0.0
        %359 = vmatprep.subr.mxu0 0.0
        %360 = vmatpush1.msra.mxu0 0.0
        %361 = vmatprep.subr.mxu0 0.0
        %362 = vmatpush1.msra.mxu0 0.0
        %363 = vmatprep.subr.mxu0 0.0
        %364 = vmatpush1.msra.mxu0 0.0
        %365 = vmatprep.subr.mxu0 0.0
        %366 = vmatpush1.msra.mxu0 0.0
        %367 = vmatprep.subr.mxu0 0.0
        %368 = vmatpush1.msra.mxu0 0.0
        %369 = vmatprep.subr.mxu0 0.0
        %370 = vmatpush1.msra.mxu0 0.0
        %371 = vmatprep.subr.mxu0 0.0
        %372 = vmatpush1.msra.mxu0 0.0
        %373 = vmatprep.subr.mxu0 0.0
        %374 = vmatpush1.msra.mxu0 0.0
        %375 = vmatprep.subr.mxu0 0.0
        %376 = vmatpush1.msra.mxu0 0.0
        %377 = vmatprep.subr.mxu0 0.0
        %378 = vmatpush1.msra.mxu0 0.0
        %379 = vmatprep.subr.mxu0 0.0
        %380 = vmatpush1.msra.mxu0 0.0
        %381 = vmatprep.subr.mxu0 0.0
        %382 = vmatpush1.msra.mxu0 0.0
        %383 = vmatprep.subr.mxu0 0.0
        %384 = vmatpush1.msra.mxu0 0.0
        %385 = vmatprep.subr.mxu0 0.0
        %386 = vmatpush1.msra.mxu0 0.0
        %387 = vmatprep.subr.mxu0 0.0
        %388 = vmatpush1.msra.mxu0 0.0
        %389 = vmatprep.subr.mxu0 0.0
        %390 = vmatpush1.msra.mxu0 0.0
        %391 = vmatprep.subr.mxu0 0.0
        %392 = vmatpush1.msra.mxu0 0.0
        %393 = vmatprep.subr.mxu0 0.0
        %394 = vmatpush1.msra.mxu0 0.0
        %395 = vmatprep.subr.mxu0 0.0
        %396 = vmatpush1.msra.mxu0 0.0
        %397 = vmatprep.subr.mxu0 0.0
        %398 = vmatpush1.msra.mxu0 0.0
        %399 = vmatprep.subr.mxu0 0.0
        %400 = vmatpush1.msra.mxu0 0.0
        %401 = vmatprep.subr.mxu0 0.0
        %402 = vmatpush1.msra.mxu0 0.0
        %403 = vmatprep.subr.mxu0 0.0
        %404 = vmatpush1.msra.mxu0 0.0
        %405 = vmatprep.mubr.f32.mxu0 0.0
        %406 = vmatmul.mubr.f32.gmra.mrb[0].mxu0 %v336
        %v407 = vpop.f32.mrb[0].mxu0
        %v408 = vadd.f32 0.0, %v407
        %v409 = vpop.f32.mrb[0].mxu0
        %v410 = vadd.f32 0.0, %v409
        %411 = vmatprep.mubr.f32.mxu0 0.0
        %412 = vmatmul.mubr.f32.gmra.mrb[0].mxu0 %v339
        %v413 = vpop.f32.mrb[0].mxu0
        %v414 = vadd.f32 0.0, %v413
        %v415 = vpop.f32.mrb[0].mxu0
        %v416 = vadd.f32 0.0, %v415
        %417 = vdwg.mxu0
        %v419 = vsel %vm334, %v322, 0
        %v422 = vsel %vm334, %v323, 0
        %424 = vmatprep.subr.mxu0 %v325
        %425 = vmatpush1.msra.mxu0 %v324
        %426 = vmatprep.subr.mxu0 %v327
        %427 = vmatpush1.msra.mxu0 %v326
        %428 = vmatprep.subr.mxu0 0.0
        %429 = vmatpush1.msra.mxu0 0.0
        %430 = vmatprep.subr.mxu0 0.0
        %431 = vmatpush1.msra.mxu0 0.0
        %432 = vmatprep.subr.mxu0 0.0
        %433 = vmatpush1.msra.mxu0 0.0
        %434 = vmatprep.subr.mxu0 0.0
        %435 = vmatpush1.msra.mxu0 0.0
        %436 = vmatprep.subr.mxu0 0.0
        %437 = vmatpush1.msra.mxu0 0.0
        %438 = vmatprep.subr.mxu0 0.0
        %439 = vmatpush1.msra.mxu0 0.0
        %440 = vmatprep.subr.mxu0 0.0
        %441 = vmatpush1.msra.mxu0 0.0
        %442 = vmatprep.subr.mxu0 0.0
        %443 = vmatpush1.msra.mxu0 0.0
        %444 = vmatprep.subr.mxu0 0.0
        %445 = vmatpush1.msra.mxu0 0.0
        %446 = vmatprep.subr.mxu0 0.0
        %447 = vmatpush1.msra.mxu0 0.0
        %448 = vmatprep.subr.mxu0 0.0
        %449 = vmatpush1.msra.mxu0 0.0
        %450 = vmatprep.subr.mxu0 0.0
        %451 = vmatpush1.msra.mxu0 0.0
        %452 = vmatprep.subr.mxu0 0.0
        %453 = vmatpush1.msra.mxu0 0.0
        %454 = vmatprep.subr.mxu0 0.0
        %455 = vmatpush1.msra.mxu0 0.0
        %456 = vmatprep.subr.mxu0 0.0
        %457 = vmatpush1.msra.mxu0 0.0
        %458 = vmatprep.subr.mxu0 0.0
        %459 = vmatpush1.msra.mxu0 0.0
        %460 = vmatprep.subr.mxu0 0.0
        %461 = vmatpush1.msra.mxu0 0.0
        %462 = vmatprep.subr.mxu0 0.0
        %463 = vmatpush1.msra.mxu0 0.0
        %464 = vmatprep.subr.mxu0 0.0
        %465 = vmatpush1.msra.mxu0 0.0
        %466 = vmatprep.subr.mxu0 0.0
        %467 = vmatpush1.msra.mxu0 0.0
        %468 = vmatprep.subr.mxu0 0.0
        %469 = vmatpush1.msra.mxu0 0.0
        %470 = vmatprep.subr.mxu0 0.0
        %471 = vmatpush1.msra.mxu0 0.0
        %472 = vmatprep.subr.mxu0 0.0
        %473 = vmatpush1.msra.mxu0 0.0
        %474 = vmatprep.subr.mxu0 0.0
        %475 = vmatpush1.msra.mxu0 0.0
        %476 = vmatprep.subr.mxu0 0.0
        %477 = vmatpush1.msra.mxu0 0.0
        %478 = vmatprep.subr.mxu0 0.0
        %479 = vmatpush1.msra.mxu0 0.0
        %480 = vmatprep.subr.mxu0 0.0
        %481 = vmatpush1.msra.mxu0 0.0
        %482 = vmatprep.subr.mxu0 0.0
        %483 = vmatpush1.msra.mxu0 0.0
        %484 = vmatprep.subr.mxu0 0.0
        %485 = vmatpush1.msra.mxu0 0.0
        %486 = vmatprep.subr.mxu0 0.0
        %487 = vmatpush1.msra.mxu0 0.0
        %488 = vmatprep.mubr.f32.mxu0 0.0
        %489 = vmatmul.mubr.f32.gmra.mrb[0].mxu0 %v419
        %v490 = vpop.f32.mrb[0].mxu0
        %v491 = vadd.f32 %v408, %v490
        %v492 = vpop.f32.mrb[0].mxu0
        %v493 = vadd.f32 %v410, %v492
        %494 = vmatprep.mubr.f32.mxu0 0.0
        %495 = vmatmul.mubr.f32.gmra.mrb[0].mxu0 %v422
        %v496 = vpop.f32.mrb[0].mxu0
        %v497 = vadd.f32 %v414, %v496
        %v498 = vpop.f32.mrb[0].mxu0
        %v499 = vadd.f32 %v416, %v498
        %500 = vdwg.mxu0
        %v501 = vld [vmem:[%s4] sm:$0xff]
        %v502 = vld [vmem:[%s4 + $0x8] sm:$0xff]
        %504 = vset.pattern.permute.xlu0 0
        %505 = vperm.xlu0 %504, %v501
        %v506 = vpop.permute.xlu0 %505
        %509 = vset.pattern.permute.xlu0 0
        %510 = vperm.xlu0 %509, %v502
        %v511 = vpop.permute.xlu0 %510
        %v513 = vadd.f32 %v491, %v506
        %v514 = vadd.f32 %v493, %v506
        %v515 = vadd.f32 %v497, %v511
        %v516 = vadd.f32 %v499, %v511
        %517 = vst [vmem:[%s318] sm:$0xff] %v513
        %518 = vst [vmem:[%s318 + $0x8] sm:$0xff] %v514
        %519 = vst [vmem:[%s318 + $0x10] sm:$0xff] %v515
        %520 = vst [vmem:[%s318 + $0x18] sm:$0xff] %v516
        %s521 = sand.u32 %s166, 1
        %s522 = scalar_lea.sflag [#allocation4], %s521
        %s523 = sand.u32 %s166, 1
        %s524 = smul.addr %s523, 32
        %s525 = scalar_lea.vmem [#allocation8], %s524
        // Predicated region
        $region53: #{tpu_custom_call.1} parent=39 // pred_check
          %p526 = pneg %p176
        $region54: #{tpu_custom_call.1} parent=39 // pred_check_branch
          %528 = sbr.rel (%p526) target = $region56
        $region55: #{tpu_custom_call.1} parent=39 // pred_region
          %s529 = smul.u32 2, %s30
          %s531 = ssub.s32 512, 512
          %532 = vsyncadd %s522, %s531
          %s533 = smul.addr %s29, 4
          %s534 = sadd.s32 %s529, %s533
          %s535 = smul.addr %s534, 128
          %s536 = scalar_lea.hbm %s5, %s535
          %s537 = sshll.u32 %s525, 4
          %s538 = int_to_ptr.vmem [resolvable:$true] %s537
          %543 = dma.vmem_to_hbm [thread:$0]  %s538, 512, %s536, %s522, 256, 256, 16
        $region56: #{tpu_custom_call.1} parent=39 // pred_fallthru
          _
      $region40: #{tpu_custom_call.1} parent=5 // pred_fallthru
        _
      %p544 = scmp.le.s32.totalorder 2, %s20
      // Predicated region
      $region57: #{tpu_custom_call.1} parent=5 // pred_check
        %p545 = pneg %p544
      $region58: #{tpu_custom_call.1} parent=5 // pred_check_branch
        %547 = sbr.rel (%p545) target = $region60
      $region59: #{tpu_custom_call.1} parent=5 // pred_region
        %s548 = ssub.s32 %s20, 2
        // Predicated region
        $region61: #{tpu_custom_call.1} parent=59 // pred_check
          %p549 = pneg %p182
        $region62: #{tpu_custom_call.1} parent=59 // pred_check_branch
          %551 = sbr.rel (%p549) target = $region64
        $region63: #{tpu_custom_call.1} parent=59 // pred_region
          %s552 = sand.u32 %s167, 1
          %s553 = scalar_lea.sflag [#allocation4], %s552
          %s554 = sand.u32 %s167, 1
          %s555 = smul.addr %s554, 32
          %s556 = scalar_lea.vmem [#allocation8], %s555
          %557 = dma.done %s553, 512
        $region64: #{tpu_custom_call.1} parent=59 // pred_fallthru
          _
      $region60: #{tpu_custom_call.1} parent=5 // pred_fallthru
        _
    $region6: #{tpu_custom_call.1} parent=1 // loop_footer
      %s24 = sadd.s32 1, %s20
    $region7: #{tpu_custom_call.1} parent=1 // loop_footer_branch
      %19 = sbr.rel target = $region3
    $region8: #{tpu_custom_call.1} parent=1 // loop_exit
      _
    %558 = vsyncpa [#allocation3], 1
    %s559 = scalar_lea.sflag [#allocation3], 1
    %560 = vsyncpa %s559, 1
    %561 = vsyncpa [#allocation6], 1
    %s562 = scalar_lea.sflag [#allocation6], 1
    %563 = vsyncpa %s562, 1
    %564 = vsyncpa [#allocation4], 1
    %s565 = scalar_lea.sflag [#allocation4], 1
    %566 = vsyncpa %s565, 1

</llo_original>
